<compile_context>
chip_gen: v5e
topology: v5e:2x2
jax: 0.10.0
libtpu: 0.0.40
codegen_flags: <defaults>
</compile_context>

<pallas_src>
import functools

import jax
import jax.numpy as jnp
from jax.experimental import pallas as pl
from jax.experimental.pallas import tpu as pltpu

# --- model hyperparameters implied by the module -----------------------------
SPW = 20
NMUSCLES = 4                  # traindata not available; synthetic choice -> 80 features
IN_DIM = SPW * NMUSCLES       # 80
H1 = 32                       # hidden width of l1
H1_PAD = 128                  # lane-padded hidden width used inside the kernel
W2_ROWS = 8                   # sublane-padded rows for the layer-2 MXU operand
OUT_DIM = 1

TILE_M = 4096                 # default batch rows per grid step (multiple of 128)


def _round_up(n, m):
    return (n + m - 1) // m * m


def _cdiv(a, b):
    return (a + b - 1) // b


# --- Pallas kernel: fused 2-layer MLP forward (lane-dense output) -------------
def mlp_kernel(x_ref, w1_ref, b1_ref, w2r_ref, b2_ref, o_ref, *, tm, n_rows, has_tail):
    # layer 1: relu(x @ W1 + b1)  -> (tm, H1_PAD), MXU matmul, f32 accumulate.
    h = jnp.dot(x_ref[...], w1_ref[...], preferred_element_type=jnp.float32)
    h = jnp.maximum(h + b1_ref[...], 0.0)

    # layer 2 on the MXU as an NT matmul (contract the lane axis of h):
    #   (W2_ROWS, H1_PAD) . (tm, H1_PAD)^T -> (W2_ROWS, tm); row 0 is the result.
    # Rows 1..7 of w2r are zero padding; the transpose of h is fused into the
    # MXU operand push (no XLU full-tile transpose).
    res = jax.lax.dot_general(
        w2r_ref[...], h,
        dimension_numbers=(((1,), (1,)), ((), ())),
        preferred_element_type=jnp.float32,
    )
    logits = res[0:1, :] + b2_ref[0, 0]          # (1, tm), lane-dense
    y = jax.nn.sigmoid(logits)

    if has_tail:  # static: only emitted when B % tm != 0
        lane = jax.lax.broadcasted_iota(jnp.int32, (1, tm), 1)
        valid = (pl.program_id(0) * tm + lane) < n_rows
        y = jnp.where(valid, y, 0.0)

    o_ref[...] = y.astype(o_ref.dtype).reshape(o_ref.shape)


def _pad_params(params, compute_dtype):
    """Pad hidden dim 32 -> 128 with zeros (exactly preserves the result)."""
    w1, b1, w2, b2 = params
    w1p = jnp.pad(w1, ((0, 0), (0, H1_PAD - H1))).astype(compute_dtype)
    b1p = jnp.pad(b1, ((0, 0), (0, H1_PAD - H1)))                       # f32
    # layer-2 weights as a lane-major row, sublane-padded to 8 rows (row0 = w2^T)
    w2r = jnp.pad(w2.T, ((0, W2_ROWS - 1), (0, H1_PAD - H1)))           # f32 (8,128)
    return w1p, b1p, w2r, b2


def model0_forward(x, params, *, tile_m=TILE_M, compute_dtype=jnp.float32):
    """x: [B, IN_DIM] float32 -> y_pred: [B, 1] float32.

    compute_dtype=jnp.bfloat16 casts x / W1 for the layer-1 MXU matmul (halves
    the HBM read stream); accumulation and all elementwise math stay float32.
    """
    w1p, b1p, w2r, b2 = _pad_params(params, compute_dtype)
    if x.dtype != compute_dtype:
        x = x.astype(compute_dtype)

    B = x.shape[0]
    b128 = _round_up(B, 128)

    # Batch tile: multiple of 128 (lane-dense output rows), and capped so the
    # grid has >= 2 steps whenever possible (v7x: shard across both TCs).
    tm = min(_round_up(max(tile_m, 1), 128), _round_up(_cdiv(b128, 2), 128))
    grid_m = _cdiv(B, tm)          # ragged last block if B % tm != 0 (no pad copy)
    has_tail = (grid_m * tm) > B

    kernel = functools.partial(mlp_kernel, tm=tm, n_rows=B, has_tail=has_tail)

    out = pl.pallas_call(
        kernel,
        out_shape=jax.ShapeDtypeStruct((grid_m, 1, tm), jnp.float32),
        grid=(grid_m,),
        in_specs=[
            pl.BlockSpec((tm, IN_DIM), lambda i: (i, 0)),       # x: streamed over batch
            pl.BlockSpec((IN_DIM, H1_PAD), lambda i: (0, 0)),   # W1: resident
            pl.BlockSpec((1, H1_PAD), lambda i: (0, 0)),        # b1: resident
            pl.BlockSpec((W2_ROWS, H1_PAD), lambda i: (0, 0)),  # W2^T (row 0): resident
            pl.BlockSpec(memory_space=pltpu.MemorySpace.SMEM),  # b2: scalar in SMEM
        ],
        out_specs=pl.BlockSpec((1, 1, tm), lambda i: (i, 0, 0)),
        compiler_params=pltpu.CompilerParams(
            dimension_semantics=("parallel",),
            # Covers double-buffered x tiles + f32 h intermediate at large tm,
            # while staying well under v7x's 64 MiB physical VMEM.
            vmem_limit_bytes=48 * 1024 * 1024,
        ),
    )(x, w1p, b1p, w2r, b2)

    # (grid_m, 1, tm) flattens row-major in batch order; crop tail, column-ize.
    return out.reshape(grid_m * tm)[:B].reshape(B, OUT_DIM)


# --- pure-JAX reference (for correctness check) -------------------------------
def reference_forward(x, params):
    w1, b1, w2, b2 = params
    h = jnp.maximum(x @ w1 + b1, 0.0)
    return jax.nn.sigmoid(h @ w2 + b2)


# --- deterministic parameter init (mirrors PyTorch Linear default) ------------
def init_params(key):
    k1w, k1b, k2w, k2b = jax.random.split(key, 4)
    bound1 = 1.0 / jnp.sqrt(IN_DIM)
    w1 = jax.random.uniform(k1w, (IN_DIM, H1), jnp.float32, -bound1, bound1)   # [in, out]
    b1 = jax.random.uniform(k1b, (1, H1), jnp.float32, -bound1, bound1)
    bound2 = 1.0 / jnp.sqrt(H1)
    w2 = jax.random.uniform(k2w, (H1, OUT_DIM), jnp.float32, -bound2, bound2)  # [in, out]
    b2 = jax.random.uniform(k2b, (1, OUT_DIM), jnp.float32, -bound2, bound2)
    return (w1, b1, w2, b2)


if __name__ == "__main__":
    key = jax.random.PRNGKey(0)
    kp, kx = jax.random.split(key)

    params = init_params(kp)
    batch = 300  # not a multiple of 128 -> exercises ragged last block + masking
    x = jax.random.normal(kx, (batch, IN_DIM), jnp.float32)

    y1 = model0_forward(x, params)                              # tm=256, grid=2, ragged tail
    y2 = model0_forward(x, params, tile_m=128)                  # tm=128, grid=3, ragged tail
    y3 = model0_forward(x, params, compute_dtype=jnp.bfloat16)  # bf16 read path
    jax.block_until_ready((y1, y2, y3))

    y_ref = reference_forward(x, params)
    assert y1.shape == (batch, OUT_DIM)
    assert y2.shape == (batch, OUT_DIM)
    assert y3.shape == (batch, OUT_DIM)
    assert bool(jnp.allclose(y1, y_ref, atol=1e-5, rtol=1e-5))
    assert bool(jnp.allclose(y2, y_ref, atol=1e-5, rtol=1e-5))
    assert bool(jnp.allclose(y3, y_ref, atol=3e-2))             # bf16 inputs -> loose tol
    assert bool(jnp.all(jnp.isfinite(y1)) and jnp.all((y1 >= 0.0) & (y1 <= 1.0)))

    print("KERNEL_OK")
</pallas_src>

<mosaic_0001>
module attributes {stable_mosaic.version = 11 : i64} {
  func.func @mlp_kernel(%arg0: i32, %arg1: memref<256x80xf32, #tpu.memory_space<vmem>>, %arg2: memref<80x128xf32, #tpu.memory_space<vmem>>, %arg3: memref<1x128xf32, #tpu.memory_space<vmem>>, %arg4: memref<8x128xf32, #tpu.memory_space<vmem>>, %arg5: memref<1x1xf32, #tpu.memory_space<smem>>, %arg6: memref<1x1x256xf32, #tpu.memory_space<vmem>>) attributes {dimension_semantics = [#tpu.dimension_semantics<parallel>], iteration_bounds = array<i64: 2>, scalar_prefetch = 0 : i64, scratch_operands = 0 : i64, tpu.core_type = #tpu.core_type<tc>, window_params = [{transform_indices = @transform_0, window_bounds = array<i64: 256, 80>}, {pipeline_mode = #tpu.pipeline_mode<synchronous>, transform_indices = @transform_1, window_bounds = array<i64: 80, 128>}, {pipeline_mode = #tpu.pipeline_mode<synchronous>, transform_indices = @transform_2, window_bounds = array<i64: 1, 128>}, {pipeline_mode = #tpu.pipeline_mode<synchronous>, transform_indices = @transform_3, window_bounds = array<i64: 8, 128>}, {transform_indices = @transform_4, window_bounds = array<i64: 1, 1>}, {transform_indices = @transform_5, window_bounds = array<i64: 1, 1, 256>}]} {
    %c0 = arith.constant 0 : index
    %c0_0 = arith.constant 0 : index
    %0 = vector.load %arg1[%c0, %c0_0] : memref<256x80xf32, #tpu.memory_space<vmem>>, vector<256x80xf32>
    %c0_1 = arith.constant 0 : index
    %c0_2 = arith.constant 0 : index
    %1 = vector.load %arg2[%c0_1, %c0_2] : memref<80x128xf32, #tpu.memory_space<vmem>>, vector<80x128xf32>
    %cst = arith.constant dense<0.000000e+00> : vector<256x128xf32>
    %2 = tpu.matmul %0, %1, %cst {dimension_numbers = #tpu.dot_dimension_numbers<[1], [0], [0], [1], [0, 0, 1, 1], [], []>} : vector<256x80xf32>, vector<80x128xf32>, vector<256x128xf32> -> vector<256x128xf32>
    %c0_3 = arith.constant 0 : index
    %c0_4 = arith.constant 0 : index
    %3 = vector.load %arg3[%c0_3, %c0_4] : memref<1x128xf32, #tpu.memory_space<vmem>>, vector<1x128xf32>
    %4 = vector.broadcast %3 : vector<1x128xf32> to vector<256x128xf32>
    %5 = arith.addf %2, %4 : vector<256x128xf32>
    %cst_5 = arith.constant 0.000000e+00 : f32
    %6 = vector.broadcast %cst_5 : f32 to vector<256x128xf32>
    %7 = arith.maximumf %5, %6 : vector<256x128xf32>
    %c0_6 = arith.constant 0 : index
    %c0_7 = arith.constant 0 : index
    %8 = vector.load %arg4[%c0_6, %c0_7] : memref<8x128xf32, #tpu.memory_space<vmem>>, vector<8x128xf32>
    %cst_8 = arith.constant dense<0.000000e+00> : vector<8x256xf32>
    %9 = tpu.matmul %8, %7, %cst_8 {dimension_numbers = #tpu.dot_dimension_numbers<[1], [1], [0], [0], [0, 0, 1, 0], [], []>} : vector<8x128xf32>, vector<256x128xf32>, vector<8x256xf32> -> vector<8x256xf32>
    %10 = vector.extract_strided_slice %9 {offsets = [0, 0], sizes = [1, 256], strides = [1, 1]} : vector<8x256xf32> to vector<1x256xf32>
    %c0_9 = arith.constant 0 : index
    %c0_10 = arith.constant 0 : index
    %11 = memref.load %arg5[%c0_9, %c0_10] : memref<1x1xf32, #tpu.memory_space<smem>>
    %12 = vector.broadcast %11 : f32 to vector<1x256xf32>
    %13 = arith.addf %10, %12 : vector<1x256xf32>
    %14 = arith.negf %13 : vector<1x256xf32>
    %15 = math.exp %14 : vector<1x256xf32>
    %cst_11 = arith.constant 1.000000e+00 : f32
    %16 = vector.broadcast %cst_11 : f32 to vector<1x256xf32>
    %17 = arith.addf %16, %15 : vector<1x256xf32>
    %18 = arith.divf %16, %17 : vector<1x256xf32>
    %19 = tpu.iota {dimensions = array<i32: 1>} : vector<1x256xi32>
    %c256_i32 = arith.constant 256 : i32
    %20 = arith.muli %arg0, %c256_i32 : i32
    %21 = vector.broadcast %20 : i32 to vector<1x256xi32>
    %22 = arith.addi %21, %19 : vector<1x256xi32>
    %c300_i32 = arith.constant 300 : i32
    %23 = vector.broadcast %c300_i32 : i32 to vector<1x256xi32>
    %24 = arith.cmpi slt, %22, %23 : vector<1x256xi32>
    %cst_12 = arith.constant 0.000000e+00 : f32
    %25 = vector.broadcast %cst_12 : f32 to vector<1x256xf32>
    %26 = arith.select %24, %18, %25 : vector<1x256xi1>, vector<1x256xf32>
    %27 = vector.shape_cast %26 : vector<1x256xf32> to vector<1x1x256xf32>
    %c0_13 = arith.constant 0 : index
    %c0_14 = arith.constant 0 : index
    %c0_15 = arith.constant 0 : index
    %28 = vector.load %arg6[%c0_13, %c0_14, %c0_15] : memref<1x1x256xf32, #tpu.memory_space<vmem>>, vector<1x1x256xf32>
    tpu.vector_store %arg6[%c0_13, %c0_14, %c0_15], %27 {strides = array<i32>} : memref<1x1x256xf32, #tpu.memory_space<vmem>>, vector<1x1x256xf32>,
    return
  }
  func.func @transform_0(%arg0: i32) -> (i32, i32) {
    %c0_i32 = arith.constant 0 : i32
    %c0_i32_0 = arith.constant 0 : i32
    return %arg0, %c0_i32 : i32, i32
  }
  func.func @transform_1(%arg0: i32) -> (i32, i32) {
    %c0_i32 = arith.constant 0 : i32
    %c0_i32_0 = arith.constant 0 : i32
    %c0_i32_1 = arith.constant 0 : i32
    return %c0_i32, %c0_i32_0 : i32, i32
  }
  func.func @transform_2(%arg0: i32) -> (i32, i32) {
    %c0_i32 = arith.constant 0 : i32
    %c0_i32_0 = arith.constant 0 : i32
    %c0_i32_1 = arith.constant 0 : i32
    return %c0_i32, %c0_i32_0 : i32, i32
  }
  func.func @transform_3(%arg0: i32) -> (i32, i32) {
    %c0_i32 = arith.constant 0 : i32
    %c0_i32_0 = arith.constant 0 : i32
    %c0_i32_1 = arith.constant 0 : i32
    return %c0_i32, %c0_i32_0 : i32, i32
  }
  func.func @transform_4(%arg0: i32) -> (i32, i32) {
    %c0_i32 = arith.constant 0 : i32
    %c0_i32_0 = arith.constant 0 : i32
    %c0_i32_1 = arith.constant 0 : i32
    return %c0_i32, %c0_i32_0 : i32, i32
  }
  func.func @transform_5(%arg0: i32) -> (i32, i32, i32) {
    %c0_i32 = arith.constant 0 : i32
    %c0_i32_0 = arith.constant 0 : i32
    %c0_i32_1 = arith.constant 0 : i32
    return %arg0, %c0_i32, %c0_i32_0 : i32, i32, i32
  }
}

</mosaic_0001>

<llo_original>
// kernel: tpu_custom_call.1
$region0: #{tpu_custom_call.1}
  #allocation0 [shape = 'u32[]', space=smem, size = 0x4, offset = 0x4, fixed_abs, tag = 'smem constant byte address 0x4 - core index']
  #allocation1 [shape = 'u32[72,128]{1,0:T(1,128)}', space=vmem, size = 0x9000, scoped, tag = 'internal scratch']
  #allocation2 [shape = 'f32[1,1]{1,0:T(1,128)S(6)}', space=smem, size = 0x200, scoped, tag = 'scoped memory for tpu_custom_call.1']
  %s0 = inlined_call_operand.vmem [shape: f32[300,80], index: 0, kind: input, shape index: {}]
  %s1 = inlined_call_operand.vmem [shape: f32[80,128], index: 1, kind: input, shape index: {}]
  %s2 = inlined_call_operand.vmem [shape: f32[1,128], index: 2, kind: input, shape index: {}]
  %s3 = inlined_call_operand.vmem [shape: f32[8,128], index: 3, kind: input, shape index: {}]
  %s4 = inlined_call_operand.<no memory space> [shape: f32[1,1], index: 4, kind: input, shape index: {}]
  %s5 = inlined_call_operand.hbm [shape: f32[2,1,256], index: 5, kind: output, shape index: {}]
  %s6 = sld [smem:[#allocation0]]
  $region53: #{tpu_custom_call.1} parent=0
    _
  %s8 = ssub.s32 1, %s6
  %s9 = scalar_select 0, %s8, %s6
  %10 = sst [smem:[#allocation2]] %s4
  $region1: #{tpu_custom_call.1} parent=0
    #allocation3 [shape = 'u8[2048]{0}', space=vmem, size = 0x800, scoped, tag = 'output window, operand 0']
    #allocation4 [shape = 's32[2]{0}', space=sflag, size = 0x8, scoped, tag = 'scoped memory for tpu_custom_call.1']
    %11 = vsyncpa [#allocation4], 0
    %s12 = scalar_lea.sflag [#allocation4], 1
    %13 = vsyncpa %s12, 0
    loop: start=0, step=1, limit=4
    $region2: #{tpu_custom_call.1} parent=1 // loop_pre_header
      _
    $region3: #{tpu_custom_call.1} parent=1 // loop_header
      %s15 = sphi 0, %s19
      %p16 = scmp.ge.s32.totalorder %s15, 4
      %s25 = sphi 0, %s27
      %s28 = sphi 0, %s25
      %s29 = sphi 0, %s28
      %s45 = sphi 0, %s29
      %s49 = sphi 0, %s49
      %s51 = sphi 0, %s49
      %s52 = sphi 0, %s51
      %s66 = sphi 0, %s52
      %s70 = sphi 0, %s70
      %s72 = sphi 0, %s70
      %s73 = sphi 0, %s72
      %s87 = sphi 0, %s73
      %s91 = sphi 0, %s91
      %s93 = sphi 0, %s91
      %s94 = sphi 0, %s93
      %s108 = sphi 0, %s94
      %s112 = sphi 0, %s112
      %s114 = sphi 0, %s112
      %s115 = sphi 0, %s114
      %s129 = sphi 0, %s115
      %s135 = sphi 0, %s137
      %s138 = sphi 0, %s135
      %s139 = sphi 0, %s138
      %s155 = sphi 0, %s139
    $region4: #{tpu_custom_call.1} parent=1 // loop_header_branch
      %18 = sbr.rel (%p16) target = $region8
    $region5: #{tpu_custom_call.1} parent=1 // loop_body
      %s20 = ssub.s32 %s15, 1
      %s21 = ssub.s32 %s15, 2
      %s22 = sadd.s32 %s15, 1
      %s23 = ssub.s32 %s15, %s22
      %p24 = scmp.eq.s32.totalorder %s23, 0
      %s26 = sadd.s32 %s25, 1
      %s27 = scalar_select %p24, %s25, %s26
      %p30 = pneg %p24
      %p31 = scmp.eq.s32.totalorder %s15, 1
      %p32 = por %p30, %p31
      %p33 = scmp.ne.s32.totalorder %s25, %s28
      %p34 = scmp.eq.s32.totalorder %s15, 0
      %p35 = por %p33, %p34
      %p36 = scmp.ne.s32.totalorder %s25, %s28
      %p37 = scmp.eq.s32.totalorder %s20, 1
      %p38 = por %p36, %p37
      %p39 = scmp.ne.s32.totalorder %s28, %s29
      %p40 = scmp.eq.s32.totalorder %s20, 0
      %p41 = por %p39, %p40
      %p42 = scmp.ne.s32.totalorder %s28, %s29
      %p43 = scmp.eq.s32.totalorder %s21, 1
      %p44 = por %p42, %p43
      %p46 = scmp.ne.s32.totalorder %s29, %s45
      %p47 = scmp.eq.s32.totalorder %s21, 0
      %p48 = por %p46, %p47
      %s50 = sadd.s32 %s49, 1
      %p53 = scmp.eq.s32.totalorder %s15, 1
      %p54 = scmp.ne.s32.totalorder %s49, %s51
      %p55 = scmp.eq.s32.totalorder %s15, 0
      %p56 = por %p54, %p55
      %p57 = scmp.ne.s32.totalorder %s49, %s51
      %p58 = scmp.eq.s32.totalorder %s20, 1
      %p59 = por %p57, %p58
      %p60 = scmp.ne.s32.totalorder %s51, %s52
      %p61 = scmp.eq.s32.totalorder %s20, 0
      %p62 = por %p60, %p61
      %p63 = scmp.ne.s32.totalorder %s51, %s52
      %p64 = scmp.eq.s32.totalorder %s21, 1
      %p65 = por %p63, %p64
      %p67 = scmp.ne.s32.totalorder %s52, %s66
      %p68 = scmp.eq.s32.totalorder %s21, 0
      %p69 = por %p67, %p68
      %s71 = sadd.s32 %s70, 1
      %p74 = scmp.eq.s32.totalorder %s15, 1
      %p75 = scmp.ne.s32.totalorder %s70, %s72
      %p76 = scmp.eq.s32.totalorder %s15, 0
      %p77 = por %p75, %p76
      %p78 = scmp.ne.s32.totalorder %s70, %s72
      %p79 = scmp.eq.s32.totalorder %s20, 1
      %p80 = por %p78, %p79
      %p81 = scmp.ne.s32.totalorder %s72, %s73
      %p82 = scmp.eq.s32.totalorder %s20, 0
      %p83 = por %p81, %p82
      %p84 = scmp.ne.s32.totalorder %s72, %s73
      %p85 = scmp.eq.s32.totalorder %s21, 1
      %p86 = por %p84, %p85
      %p88 = scmp.ne.s32.totalorder %s73, %s87
      %p89 = scmp.eq.s32.totalorder %s21, 0
      %p90 = por %p88, %p89
      %s92 = sadd.s32 %s91, 1
      %p95 = scmp.eq.s32.totalorder %s15, 1
      %p96 = scmp.ne.s32.totalorder %s91, %s93
      %p97 = scmp.eq.s32.totalorder %s15, 0
      %p98 = por %p96, %p97
      %p99 = scmp.ne.s32.totalorder %s91, %s93
      %p100 = scmp.eq.s32.totalorder %s20, 1
      %p101 = por %p99, %p100
      %p102 = scmp.ne.s32.totalorder %s93, %s94
      %p103 = scmp.eq.s32.totalorder %s20, 0
      %p104 = por %p102, %p103
      %p105 = scmp.ne.s32.totalorder %s93, %s94
      %p106 = scmp.eq.s32.totalorder %s21, 1
      %p107 = por %p105, %p106
      %p109 = scmp.ne.s32.totalorder %s94, %s108
      %p110 = scmp.eq.s32.totalorder %s21, 0
      %p111 = por %p109, %p110
      %s113 = sadd.s32 %s112, 1
      %p116 = scmp.eq.s32.totalorder %s15, 1
      %p117 = scmp.ne.s32.totalorder %s112, %s114
      %p118 = scmp.eq.s32.totalorder %s15, 0
      %p119 = por %p117, %p118
      %p120 = scmp.ne.s32.totalorder %s112, %s114
      %p121 = scmp.eq.s32.totalorder %s20, 1
      %p122 = por %p120, %p121
      %p123 = scmp.ne.s32.totalorder %s114, %s115
      %p124 = scmp.eq.s32.totalorder %s20, 0
      %p125 = por %p123, %p124
      %p126 = scmp.ne.s32.totalorder %s114, %s115
      %p127 = scmp.eq.s32.totalorder %s21, 1
      %p128 = por %p126, %p127
      %p130 = scmp.ne.s32.totalorder %s115, %s129
      %p131 = scmp.eq.s32.totalorder %s21, 0
      %p132 = por %p130, %p131
      %s133 = ssub.s32 %s15, %s22
      %p134 = scmp.eq.s32.totalorder %s133, 0
      %s136 = sadd.s32 %s135, 1
      %s137 = scalar_select %p134, %s135, %s136
      %p140 = pneg %p134
      %p141 = scmp.eq.s32.totalorder %s15, 1
      %p142 = por %p140, %p141
      %p143 = scmp.ne.s32.totalorder %s135, %s138
      %p144 = scmp.eq.s32.totalorder %s15, 0
      %p145 = por %p143, %p144
      %p146 = scmp.ne.s32.totalorder %s135, %s138
      %p147 = scmp.eq.s32.totalorder %s20, 1
      %p148 = por %p146, %p147
      %p149 = scmp.ne.s32.totalorder %s138, %s139
      %p150 = scmp.eq.s32.totalorder %s20, 0
      %p151 = por %p149, %p150
      %p152 = scmp.ne.s32.totalorder %s138, %s139
      %p153 = scmp.eq.s32.totalorder %s21, 1
      %p154 = por %p152, %p153
      %p156 = scmp.ne.s32.totalorder %s139, %s155
      %p157 = scmp.eq.s32.totalorder %s21, 0
      %p158 = por %p156, %p157
      %p159 = scmp.le.s32.totalorder 1, %s15
      %p160 = scmp.lt.s32.totalorder %s15, 3
      %p161 = pnand %p159, %p160
      %p162 = pneg %p161
      // Predicated region
      $region9: #{tpu_custom_call.1} parent=5 // pred_check
        _
      $region10: #{tpu_custom_call.1} parent=5 // pred_check_branch
        %164 = sbr.rel (%p161) target = $region12
      $region11: #{tpu_custom_call.1} parent=5 // pred_region
        %s165 = ssub.s32 %s15, 1
        // Predicated region
        $region13: #{tpu_custom_call.1} parent=11 // pred_check
          %p166 = pneg %p62
        $region14: #{tpu_custom_call.1} parent=11 // pred_check_branch
          %168 = sbr.rel (%p166) target = $region16
        $region15: #{tpu_custom_call.1} parent=11 // pred_region
          _
        $region16: #{tpu_custom_call.1} parent=11 // pred_fallthru
          _
        // Predicated region
        $region17: #{tpu_custom_call.1} parent=11 // pred_check
          %p169 = pneg %p83
        $region18: #{tpu_custom_call.1} parent=11 // pred_check_branch
          %171 = sbr.rel (%p169) target = $region20
        $region19: #{tpu_custom_call.1} parent=11 // pred_region
          _
        $region20: #{tpu_custom_call.1} parent=11 // pred_fallthru
          _
        // Predicated region
        $region21: #{tpu_custom_call.1} parent=11 // pred_check
          %p172 = pneg %p104
        $region22: #{tpu_custom_call.1} parent=11 // pred_check_branch
          %174 = sbr.rel (%p172) target = $region24
        $region23: #{tpu_custom_call.1} parent=11 // pred_region
          _
        $region24: #{tpu_custom_call.1} parent=11 // pred_fallthru
          _
        // Predicated region
        $region25: #{tpu_custom_call.1} parent=11 // pred_check
          %p175 = pneg %p125
        $region26: #{tpu_custom_call.1} parent=11 // pred_check_branch
          %177 = sbr.rel (%p175) target = $region28
        $region27: #{tpu_custom_call.1} parent=11 // pred_region
          _
        $region28: #{tpu_custom_call.1} parent=11 // pred_fallthru
          _
      $region12: #{tpu_custom_call.1} parent=5 // pred_fallthru
        _
      %p178 = scmp.lt.s32.totalorder %s15, 2
      // Predicated region
      $region29: #{tpu_custom_call.1} parent=5 // pred_check
        %p179 = pneg %p178
      $region30: #{tpu_custom_call.1} parent=5 // pred_check_branch
        %181 = sbr.rel (%p179) target = $region32
      $region31: #{tpu_custom_call.1} parent=5 // pred_region
        // Predicated region
        $region33: #{tpu_custom_call.1} parent=31 // pred_check
          %p182 = pneg %p35
        $region34: #{tpu_custom_call.1} parent=31 // pred_check_branch
          %184 = sbr.rel (%p182) target = $region36
        $region35: #{tpu_custom_call.1} parent=31 // pred_region
          %s185 = smul.u32 32, %s15
          %s186 = ssub.s32 38, %s185
          %p187 = scmp.lt.s32.totalorder %s186, 32
          %s188 = scalar_select %p187, %s186, 32
          %s189 = smul.u32 8, %s188
          %p190 = scmp.lt.s32.totalorder %s185, 37
          %s191 = scalar_select %p190, %s185, 37
          %s192 = smul.addr %s191, 8
          %s193 = scalar_lea.vmem %s0, %s192
          %s194 = smul.u32 32, %s15
          %s195 = ssub.s32 38, %s194
          %p196 = scmp.lt.s32.totalorder %s195, 32
          %s197 = scalar_select %p196, %s195, 32
          %s198 = smul.u32 8, %s197
        $region36: #{tpu_custom_call.1} parent=31 // pred_fallthru
          _
      $region32: #{tpu_custom_call.1} parent=5 // pred_fallthru
        _
      %p199 = scmp.le.s32.totalorder 1, %s15
      %p200 = scmp.lt.s32.totalorder %s15, 3
      %p201 = pnand %p199, %p200
      %p202 = pneg %p201
      // Predicated region
      $region37: #{tpu_custom_call.1} parent=5 // pred_check
        _
      $region38: #{tpu_custom_call.1} parent=5 // pred_check_branch
        %204 = sbr.rel (%p201) target = $region40
      $region39: #{tpu_custom_call.1} parent=5 // pred_region
        %s205 = ssub.s32 %s15, 1
        %s206 = smul.u32 32, %s20
        %s207 = ssub.s32 38, %s206
        %p208 = scmp.lt.s32.totalorder %s207, 32
        %s209 = scalar_select %p208, %s207, 32
        %s210 = smul.u32 8, %s209
        %p211 = scmp.lt.s32.totalorder %s206, 37
        %s212 = scalar_select %p211, %s206, 37
        %s213 = smul.addr %s212, 8
        %s214 = scalar_lea.vmem %s0, %s213
        %p215 = pneg %p41
        %p216 = pneg %p38
        %p217 = pneg %p62
        %p218 = pneg %p59
        %p219 = pneg %p83
        %p220 = pneg %p80
        %p221 = pneg %p104
        %p222 = pneg %p101
        %p223 = pneg %p125
        %p224 = pneg %p122
        %p225 = pneg %p151
        %p226 = pneg %p148
        %s227 = sand.u32 %s138, 1
        %s228 = scalar_lea.sflag [#allocation4], %s227
        %s229 = sand.u32 %s138, 1
        %s230 = smul.addr %s229, 2
        %s231 = scalar_lea.vmem [#allocation3], %s230
        %s232 = smul.u32 32, %s20
        %s233 = ssub.s32 38, %s232
        %p234 = scmp.lt.s32.totalorder %s233, 32
        %s235 = scalar_select %p234, %s233, 32
        %s236 = smul.u32 8, %s235
        %p237 = scmp.lt.s32.totalorder %s232, 37
        %s238 = scalar_select %p237, %s232, 37
        %s239 = smul.addr %s238, 8
        %s240 = scalar_lea.vmem %s0, %s239
        %s241 = smul.u32 32, %s20
        %s242 = ssub.s32 38, %s241
        %p243 = scmp.lt.s32.totalorder %s242, 32
        %s244 = scalar_select %p243, %s242, 32
        %s245 = smul.u32 8, %s244
        %v246 = vld [vmem:[%s240] sm:$0xff]
        %v247 = vld [vmem:[%s240 + $0x8] sm:$0xff]
        %v248 = vld [vmem:[%s240 + $0x10] sm:$0xff]
        %v249 = vld [vmem:[%s240 + $0x18] sm:$0xff]
        %v250 = vld [vmem:[%s240 + $0x20] sm:$0xff]
        %v251 = vld [vmem:[%s240 + $0x28] sm:$0xff]
        %v252 = vld [vmem:[%s240 + $0x30] sm:$0xff]
        %v253 = vld [vmem:[%s240 + $0x38] sm:$0xff]
        %v254 = vld [vmem:[%s240 + $0x40] sm:$0xff]
        %v255 = vld [vmem:[%s240 + $0x48] sm:$0xff]
        %v256 = vld [vmem:[%s240 + $0x50] sm:$0xff]
        %v257 = vld [vmem:[%s240 + $0x58] sm:$0xff]
        %v258 = vld [vmem:[%s240 + $0x60] sm:$0xff]
        %v259 = vld [vmem:[%s240 + $0x68] sm:$0xff]
        %v260 = vld [vmem:[%s240 + $0x70] sm:$0xff]
        %v261 = vld [vmem:[%s240 + $0x78] sm:$0xff]
        %v262 = vld [vmem:[%s240 + $0x80] sm:$0xff]
        %v263 = vld [vmem:[%s240 + $0x88] sm:$0xff]
        %v264 = vld [vmem:[%s240 + $0x90] sm:$0xff]
        %v265 = vld [vmem:[%s240 + $0x98] sm:$0xff]
        %v266 = vld [vmem:[%s240 + $0xa0] sm:$0xff]
        %v267 = vld [vmem:[%s240 + $0xa8] sm:$0xff]
        %v268 = vld [vmem:[%s240 + $0xb0] sm:$0xff]
        %v269 = vld [vmem:[%s240 + $0xb8] sm:$0xff]
        %v270 = vld [vmem:[%s240 + $0xc0] sm:$0xff]
        %v271 = vld [vmem:[%s240 + $0xc8] sm:$0xff]
        %v272 = vld [vmem:[%s240 + $0xd0] sm:$0xff]
        %v273 = vld [vmem:[%s240 + $0xd8] sm:$0xff]
        %v274 = vld [vmem:[%s240 + $0xe0] sm:$0xff]
        %v275 = vld [vmem:[%s240 + $0xe8] sm:$0xff]
        %v276 = vld [vmem:[%s240 + $0xf0] sm:$0xff]
        %v277 = vld [vmem:[%s240 + $0xf8] sm:$0xff]
        %v278 = vld [vmem:[%s1] sm:$0xff]
        %v279 = vld [vmem:[%s1 + $0x8] sm:$0xff]
        %v280 = vld [vmem:[%s1 + $0x10] sm:$0xff]
        %v281 = vld [vmem:[%s1 + $0x18] sm:$0xff]
        %v282 = vld [vmem:[%s1 + $0x20] sm:$0xff]
        %v283 = vld [vmem:[%s1 + $0x28] sm:$0xff]
        %v284 = vld [vmem:[%s1 + $0x30] sm:$0xff]
        %v285 = vld [vmem:[%s1 + $0x38] sm:$0xff]
        %v286 = vld [vmem:[%s1 + $0x40] sm:$0xff]
        %v287 = vld [vmem:[%s1 + $0x48] sm:$0xff]
        %v288 = vld [vmem:[%s2] sm:$0x1]
        %v290 = vperm.slane %v288, 0
        %vm292 = vcmask 654336
        %v294 = vsel %vm292, %v246, 0
        %v297 = vsel %vm292, %v247, 0
        %v300 = vsel %vm292, %v248, 0
        %v303 = vsel %vm292, %v249, 0
        %v306 = vsel %vm292, %v250, 0
        %v309 = vsel %vm292, %v251, 0
        %v312 = vsel %vm292, %v252, 0
        %v315 = vsel %vm292, %v253, 0
        %v318 = vsel %vm292, %v254, 0
        %v321 = vsel %vm292, %v255, 0
        %v324 = vsel %vm292, %v256, 0
        %v327 = vsel %vm292, %v257, 0
        %v330 = vsel %vm292, %v258, 0
        %v333 = vsel %vm292, %v259, 0
        %v336 = vsel %vm292, %v260, 0
        %v339 = vsel %vm292, %v261, 0
        %v342 = vsel %vm292, %v262, 0
        %v345 = vsel %vm292, %v263, 0
        %v348 = vsel %vm292, %v264, 0
        %v351 = vsel %vm292, %v265, 0
        %v354 = vsel %vm292, %v266, 0
        %v357 = vsel %vm292, %v267, 0
        %v360 = vsel %vm292, %v268, 0
        %v363 = vsel %vm292, %v269, 0
        %v366 = vsel %vm292, %v270, 0
        %v369 = vsel %vm292, %v271, 0
        %v372 = vsel %vm292, %v272, 0
        %v375 = vsel %vm292, %v273, 0
        %v378 = vsel %vm292, %v274, 0
        %v381 = vsel %vm292, %v275, 0
        %v384 = vsel %vm292, %v276, 0
        %v387 = vsel %vm292, %v277, 0
        %389 = vmatpush.msra.mxu0 0.0
        %390 = vmatpush.msra.mxu0 0.0
        %391 = vmatpush.msra.mxu0 0.0
        %392 = vmatpush.msra.mxu0 0.0
        %393 = vmatpush.msra.mxu0 0.0
        %394 = vmatpush.msra.mxu0 0.0
        %395 = vmatpush.msra.mxu0 %v287
        %396 = vmatpush.msra.mxu0 %v286
        %397 = vmatpush.msra.mxu0 %v285
        %398 = vmatpush.msra.mxu0 %v284
        %399 = vmatpush.msra.mxu0 %v283
        %400 = vmatpush.msra.mxu0 %v282
        %401 = vmatpush.msra.mxu0 %v281
        %402 = vmatpush.msra.mxu0 %v280
        %403 = vmatpush.msra.mxu0 %v279
        %404 = vmatpush.msra.mxu0 %v278
        %405 = vmatmul.f32.gmra.mxu0 %v294
        %v406 = vpop.f32.mrf.mxu0
        %v407 = vadd.f32 %v290, %v406
        %408 = vmatmul.f32.gmra.mxu0 %v297
        %v409 = vpop.f32.mrf.mxu0
        %v410 = vadd.f32 %v290, %v409
        %411 = vmatmul.f32.gmra.mxu0 %v300
        %v412 = vpop.f32.mrf.mxu0
        %v413 = vadd.f32 %v290, %v412
        %414 = vmatmul.f32.gmra.mxu0 %v303
        %v415 = vpop.f32.mrf.mxu0
        %v416 = vadd.f32 %v290, %v415
        %417 = vmatmul.f32.gmra.mxu0 %v306
        %v418 = vpop.f32.mrf.mxu0
        %v419 = vadd.f32 %v290, %v418
        %420 = vmatmul.f32.gmra.mxu0 %v309
        %v421 = vpop.f32.mrf.mxu0
        %v422 = vadd.f32 %v290, %v421
        %423 = vmatmul.f32.gmra.mxu0 %v312
        %v424 = vpop.f32.mrf.mxu0
        %v425 = vadd.f32 %v290, %v424
        %426 = vmatmul.f32.gmra.mxu0 %v315
        %v427 = vpop.f32.mrf.mxu0
        %v428 = vadd.f32 %v290, %v427
        %429 = vmatmul.f32.gmra.mxu0 %v318
        %v430 = vpop.f32.mrf.mxu0
        %v431 = vadd.f32 %v290, %v430
        %432 = vmatmul.f32.gmra.mxu0 %v321
        %v433 = vpop.f32.mrf.mxu0
        %v434 = vadd.f32 %v290, %v433
        %435 = vmatmul.f32.gmra.mxu0 %v324
        %v436 = vpop.f32.mrf.mxu0
        %v437 = vadd.f32 %v290, %v436
        %438 = vmatmul.f32.gmra.mxu0 %v327
        %v439 = vpop.f32.mrf.mxu0
        %v440 = vadd.f32 %v290, %v439
        %441 = vmatmul.f32.gmra.mxu0 %v330
        %v442 = vpop.f32.mrf.mxu0
        %v443 = vadd.f32 %v290, %v442
        %444 = vmatmul.f32.gmra.mxu0 %v333
        %v445 = vpop.f32.mrf.mxu0
        %v446 = vadd.f32 %v290, %v445
        %447 = vmatmul.f32.gmra.mxu0 %v336
        %v448 = vpop.f32.mrf.mxu0
        %v449 = vadd.f32 %v290, %v448
        %450 = vmatmul.f32.gmra.mxu0 %v339
        %v451 = vpop.f32.mrf.mxu0
        %v452 = vadd.f32 %v290, %v451
        %453 = vmatmul.f32.gmra.mxu0 %v342
        %v454 = vpop.f32.mrf.mxu0
        %v455 = vadd.f32 %v290, %v454
        %456 = vmatmul.f32.gmra.mxu0 %v345
        %v457 = vpop.f32.mrf.mxu0
        %v458 = vadd.f32 %v290, %v457
        %459 = vmatmul.f32.gmra.mxu0 %v348
        %v460 = vpop.f32.mrf.mxu0
        %v461 = vadd.f32 %v290, %v460
        %462 = vmatmul.f32.gmra.mxu0 %v351
        %v463 = vpop.f32.mrf.mxu0
        %v464 = vadd.f32 %v290, %v463
        %465 = vmatmul.f32.gmra.mxu0 %v354
        %v466 = vpop.f32.mrf.mxu0
        %v467 = vadd.f32 %v290, %v466
        %468 = vmatmul.f32.gmra.mxu0 %v357
        %v469 = vpop.f32.mrf.mxu0
        %v470 = vadd.f32 %v290, %v469
        %471 = vmatmul.f32.gmra.mxu0 %v360
        %v472 = vpop.f32.mrf.mxu0
        %v473 = vadd.f32 %v290, %v472
        %474 = vmatmul.f32.gmra.mxu0 %v363
        %v475 = vpop.f32.mrf.mxu0
        %v476 = vadd.f32 %v290, %v475
        %477 = vmatmul.f32.gmra.mxu0 %v366
        %v478 = vpop.f32.mrf.mxu0
        %v479 = vadd.f32 %v290, %v478
        %480 = vmatmul.f32.gmra.mxu0 %v369
        %v481 = vpop.f32.mrf.mxu0
        %v482 = vadd.f32 %v290, %v481
        %483 = vmatmul.f32.gmra.mxu0 %v372
        %v484 = vpop.f32.mrf.mxu0
        %v485 = vadd.f32 %v290, %v484
        %486 = vmatmul.f32.gmra.mxu0 %v375
        %v487 = vpop.f32.mrf.mxu0
        %v488 = vadd.f32 %v290, %v487
        %489 = vmatmul.f32.gmra.mxu0 %v378
        %v490 = vpop.f32.mrf.mxu0
        %v491 = vadd.f32 %v290, %v490
        %492 = vmatmul.f32.gmra.mxu0 %v381
        %v493 = vpop.f32.mrf.mxu0
        %v494 = vadd.f32 %v290, %v493
        %495 = vmatmul.f32.gmra.mxu0 %v384
        %v496 = vpop.f32.mrf.mxu0
        %v497 = vadd.f32 %v290, %v496
        %498 = vmatmul.f32.gmra.mxu0 %v387
        %v499 = vpop.f32.mrf.mxu0
        %v500 = vadd.f32 %v290, %v499
        %501 = vdwg.mxu0
        %v502 = vmax.f32 %v407, 0.0
        %v503 = vmax.f32 %v410, 0.0
        %v504 = vmax.f32 %v413, 0.0
        %v505 = vmax.f32 %v416, 0.0
        %v506 = vmax.f32 %v419, 0.0
        %v507 = vmax.f32 %v422, 0.0
        %v508 = vmax.f32 %v425, 0.0
        %v509 = vmax.f32 %v428, 0.0
        %v510 = vmax.f32 %v431, 0.0
        %v511 = vmax.f32 %v434, 0.0
        %v512 = vmax.f32 %v437, 0.0
        %v513 = vmax.f32 %v440, 0.0
        %v514 = vmax.f32 %v443, 0.0
        %v515 = vmax.f32 %v446, 0.0
        %v516 = vmax.f32 %v449, 0.0
        %v517 = vmax.f32 %v452, 0.0
        %v518 = vmax.f32 %v455, 0.0
        %v519 = vmax.f32 %v458, 0.0
        %v520 = vmax.f32 %v461, 0.0
        %v521 = vmax.f32 %v464, 0.0
        %v522 = vmax.f32 %v467, 0.0
        %v523 = vmax.f32 %v470, 0.0
        %v524 = vmax.f32 %v473, 0.0
        %v525 = vmax.f32 %v476, 0.0
        %v526 = vmax.f32 %v479, 0.0
        %v527 = vmax.f32 %v482, 0.0
        %v528 = vmax.f32 %v485, 0.0
        %v529 = vmax.f32 %v488, 0.0
        %v530 = vmax.f32 %v491, 0.0
        %v531 = vmax.f32 %v494, 0.0
        %v532 = vmax.f32 %v497, 0.0
        %v533 = vmax.f32 %v500, 0.0
        %v534 = vld [vmem:[%s3] sm:$0xff]
        %535 = vmatpush.xpose.msra.mxu0 %v517
        %536 = vmatpush.xpose.msra.mxu0 %v516
        %537 = vmatpush.xpose.msra.mxu0 %v515
        %538 = vmatpush.xpose.msra.mxu0 %v514
        %539 = vmatpush.xpose.msra.mxu0 %v513
        %540 = vmatpush.xpose.msra.mxu0 %v512
        %541 = vmatpush.xpose.msra.mxu0 %v511
        %542 = vmatpush.xpose.msra.mxu0 %v510
        %543 = vmatpush.xpose.msra.mxu0 %v509
        %544 = vmatpush.xpose.msra.mxu0 %v508
        %545 = vmatpush.xpose.msra.mxu0 %v507
        %546 = vmatpush.xpose.msra.mxu0 %v506
        %547 = vmatpush.xpose.msra.mxu0 %v505
        %548 = vmatpush.xpose.msra.mxu0 %v504
        %549 = vmatpush.xpose.msra.mxu0 %v503
        %550 = vmatpush.xpose.msra.mxu0 %v502
        %551 = vmatmul.f32.gmra.mxu0 %v534
        %v552 = vpop.f32.mrf.mxu0
        %v553 = vadd.f32 0.0, %v552
        %554 = vdwg.mxu0
        %555 = vmatpush.xpose.msra.mxu0 %v533
        %556 = vmatpush.xpose.msra.mxu0 %v532
        %557 = vmatpush.xpose.msra.mxu0 %v531
        %558 = vmatpush.xpose.msra.mxu0 %v530
        %559 = vmatpush.xpose.msra.mxu0 %v529
        %560 = vmatpush.xpose.msra.mxu0 %v528
        %561 = vmatpush.xpose.msra.mxu0 %v527
        %562 = vmatpush.xpose.msra.mxu0 %v526
        %563 = vmatpush.xpose.msra.mxu0 %v525
        %564 = vmatpush.xpose.msra.mxu0 %v524
        %565 = vmatpush.xpose.msra.mxu0 %v523
        %566 = vmatpush.xpose.msra.mxu0 %v522
        %567 = vmatpush.xpose.msra.mxu0 %v521
        %568 = vmatpush.xpose.msra.mxu0 %v520
        %569 = vmatpush.xpose.msra.mxu0 %v519
        %570 = vmatpush.xpose.msra.mxu0 %v518
        %571 = vmatmul.f32.gmra.mxu0 %v534
        %v572 = vpop.f32.mrf.mxu0
        %v573 = vadd.f32 0.0, %v572
        %574 = vdwg.mxu0
        %s575 = sld [smem:[#allocation2]]
        %v576 = vstv %s575
        %v577 = vadd.f32 %v553, %v576
        %v578 = vadd.f32 %v573, %v576
        %v579 = vxor.u32 %v577, 2147483648
        %v580 = vxor.u32 %v578, 2147483648
        %v581 = vmul.f32 %v579, 1.442695
        %v582 = vpow.pop %v581
        %v583 = vmul.f32 %v580, 1.442695
        %v584 = vpow.pop %v583
        %v585 = vadd.f32 %v582, 1.0
        %v586 = vadd.f32 %v584, 1.0
        %v587 = vrcp.pop %v585
        %v588 = vmul.f32 %v585, %v587
        %v589 = vsub.f32 1.0, %v588
        %v590 = vmul.f32 %v587, %v589
        %v591 = vadd.f32 %v587, %v590
        %vm592 = vweird.f32 %v585
        %vm593 = vweird.f32 %v587
        %vm594 = vmor %vm592, %vm593
        %v595 = vsel %vm594, %v587, %v591
        %v596 = vand.u32 2147483647, %v585
        %vm597 = vcmp.eq.f32.partialorder %v596, 8.507059e+37
        %v598 = vand.u32 %v585, 2147483648
        %v599 = vor.u32 1.1754944e-38, %v598
        %v600 = vsel %vm597, %v599, %v595
        %v601 = vmul.f32 1.0, %v600
        %v602 = vrcp.pop %v586
        %v603 = vmul.f32 %v586, %v602
        %v604 = vsub.f32 1.0, %v603
        %v605 = vmul.f32 %v602, %v604
        %v606 = vadd.f32 %v602, %v605
        %vm607 = vweird.f32 %v586
        %vm608 = vweird.f32 %v602
        %vm609 = vmor %vm607, %vm608
        %v610 = vsel %vm609, %v602, %v606
        %v611 = vand.u32 2147483647, %v586
        %vm612 = vcmp.eq.f32.partialorder %v611, 8.507059e+37
        %v613 = vand.u32 %v586, 2147483648
        %v614 = vor.u32 1.1754944e-38, %v613
        %v615 = vsel %vm612, %v614, %v610
        %v616 = vmul.f32 1.0, %v615
        %v617 = vlaneseq
        %v618 = vand.u32 %v617, 127
        %v619 = vadd.s32 %v618, 128
        %s620 = smul.u32 %s20, 256
        %v621 = vstv %s620
        %v622 = vadd.s32 %v621, %v618
        %v623 = vadd.s32 %v621, %v619
        %vm624 = vcmp.lt.s32.totalorder %v622, 300
        %vm625 = vcmp.lt.s32.totalorder %v623, 300
        %v626 = vsel %vm624, %v601, 0.0
        %v627 = vsel %vm625, %v616, 0.0
        %v630 = vrot.slane %v627, 7
        %vm631 = vcmask 1040384
        %v632 = vsel %vm631, %v626, %v630
        %v634 = vlaneseq
        %vm635 = vcmp.ge.s32.totalorder %v634, 0
        %vm636 = vcmp.lt.s32.totalorder %v634, 256
        %vm637 = vmand %vm635, %vm636
        %638 = vst.msk [vmem:[%s231] sm:$0x3] %vm637, %v632
        %s639 = sand.u32 %s138, 1
        %s640 = scalar_lea.sflag [#allocation4], %s639
        %s641 = sand.u32 %s138, 1
        %s642 = smul.addr %s641, 2
        %s643 = scalar_lea.vmem [#allocation3], %s642
        // Predicated region
        $region41: #{tpu_custom_call.1} parent=39 // pred_check
          %p644 = pneg %p148
        $region42: #{tpu_custom_call.1} parent=39 // pred_check_branch
          %646 = sbr.rel (%p644) target = $region44
        $region43: #{tpu_custom_call.1} parent=39 // pred_region
          %648 = vsyncadd %s640, 0
          %s649 = smul.addr %s20, 2
          %s650 = scalar_lea.hbm %s5, %s649
          %s652 = sshll.u32 %s643, 4
          %s653 = int_to_ptr.vmem [resolvable:$true] %s652
          %s654 = sshll.u32 %s650, 4
          %s655 = int_to_ptr.hbm [resolvable:$true] %s654
          %657 = dma.vmem_to_hbm [thread:$0]  %s653, 32, %s655, %s640
        $region44: #{tpu_custom_call.1} parent=39 // pred_fallthru
          _
      $region40: #{tpu_custom_call.1} parent=5 // pred_fallthru
        _
      %p658 = scmp.le.s32.totalorder 2, %s15
      // Predicated region
      $region45: #{tpu_custom_call.1} parent=5 // pred_check
        %p659 = pneg %p658
      $region46: #{tpu_custom_call.1} parent=5 // pred_check_branch
        %661 = sbr.rel (%p659) target = $region48
      $region47: #{tpu_custom_call.1} parent=5 // pred_region
        %s662 = ssub.s32 %s15, 2
        // Predicated region
        $region49: #{tpu_custom_call.1} parent=47 // pred_check
          %p663 = pneg %p154
        $region50: #{tpu_custom_call.1} parent=47 // pred_check_branch
          %665 = sbr.rel (%p663) target = $region52
        $region51: #{tpu_custom_call.1} parent=47 // pred_region
          %s666 = sand.u32 %s139, 1
          %s667 = scalar_lea.sflag [#allocation4], %s666
          %s668 = sand.u32 %s139, 1
          %s669 = smul.addr %s668, 2
          %s670 = scalar_lea.vmem [#allocation3], %s669
          %672 = dma.done %s667, 32
        $region52: #{tpu_custom_call.1} parent=47 // pred_fallthru
          _
      $region48: #{tpu_custom_call.1} parent=5 // pred_fallthru
        _
    $region6: #{tpu_custom_call.1} parent=1 // loop_footer
      %s19 = sadd.s32 1, %s15
    $region7: #{tpu_custom_call.1} parent=1 // loop_footer_branch
      %14 = sbr.rel target = $region3
    $region8: #{tpu_custom_call.1} parent=1 // loop_exit
      _
    %673 = vsyncpa [#allocation4], 1
    %s674 = scalar_lea.sflag [#allocation4], 1
    %675 = vsyncpa %s674, 1

</llo_original>
